<compile_context>
chip_gen: v7x
topology: tpu7x:2x2x1
jax: 0.10.0
libtpu: 0.0.40
codegen_flags: <defaults>
</compile_context>

<pallas_src>
import functools

import jax
import jax.numpy as jnp
from jax.experimental import pallas as pl
from jax.experimental.pallas import tpu as pltpu


def _round_up(n, m):
    return ((n + m - 1) // m) * m


def _patch_embed_kernel_nonorm(x_ref, w_ref, b_ref, o_ref):
    # x_ref: (TM, K), w_ref: (K, E_pad), b_ref: (1, E_pad), o_ref: (TM, E_pad)
    y = jnp.dot(x_ref[...], w_ref[...], preferred_element_type=jnp.float32)
    y = y + b_ref[...]
    o_ref[...] = y.astype(o_ref.dtype)


def _patch_embed_kernel_norm(x_ref, w_ref, b_ref, g_ref, beta_ref, o_ref, *, embed_dim, eps):
    # x_ref: (TM, K), w_ref: (K, E_pad), b/g/beta: (1, E_pad), o_ref: (TM, E_pad)
    y = jnp.dot(x_ref[...], w_ref[...], preferred_element_type=jnp.float32)
    y = y + b_ref[...]
    # Padded lanes (>= embed_dim) of y are exactly zero (weight/bias columns were zero-padded),
    # so the plain sum already equals the sum over the real E lanes.
    mean = jnp.sum(y, axis=-1, keepdims=True) * (1.0 / embed_dim)
    diff = y - mean
    e_pad = y.shape[-1]
    if e_pad != embed_dim:
        lane = jax.lax.broadcasted_iota(jnp.int32, y.shape, 1)
        diff = jnp.where(lane < embed_dim, diff, 0.0)  # exclude padded lanes from variance
    var = jnp.sum(diff * diff, axis=-1, keepdims=True) * (1.0 / embed_dim)
    y = diff * jax.lax.rsqrt(var + eps)
    y = y * g_ref[...] + beta_ref[...]
    o_ref[...] = y.astype(o_ref.dtype)


def patch_embed_pallas(x, weight, bias, gamma=None, beta=None, *,
                       patch_size=(4, 4), eps=1e-5, matmul_dtype=None):
    """x: (B, C, H, W) float32.  weight: (E, C, ph, pw).  bias: (E,).
    gamma/beta: (E,) LayerNorm params or None.  matmul_dtype: optional dtype (e.g. jnp.bfloat16)
    for the matmul operands only (accumulation & LayerNorm stay f32).
    Returns (B, E, Hp, Wp) float32 (NCHW, same as the PyTorch module)."""
    B, C, H, W = x.shape
    ph, pw = patch_size
    E = weight.shape[0]

    # Same padding semantics as the PyTorch forward (pad right / bottom to a patch multiple).
    pad_w = (-W) % pw
    pad_h = (-H) % ph
    if pad_w or pad_h:
        x = jnp.pad(x, ((0, 0), (0, 0), (0, pad_h), (0, pad_w)))
    Hp, Wp = (H + pad_h) // ph, (W + pad_w) // pw

    # Non-overlapping patches -> (B*Hp*Wp, C*ph*pw); element order (C, ph, pw) matches the
    # Conv2d weight flatten order below.
    patches = (
        x.reshape(B, C, Hp, ph, Wp, pw)
        .transpose(0, 2, 4, 1, 3, 5)
        .reshape(B * Hp * Wp, C * ph * pw)
    )
    K = C * ph * pw
    M = B * Hp * Wp

    # Lane-dense output: pad embed_dim to a multiple of 128 with zero weight/bias columns.
    E_pad = _round_up(E, 128)
    w_mat = weight.reshape(E, K).T  # (K, E)
    if E_pad != E:
        w_mat = jnp.pad(w_mat, ((0, 0), (0, E_pad - E)))
        bias = jnp.pad(bias, (0, E_pad - E))
    b_row = bias.reshape(1, E_pad).astype(jnp.float32)

    # Large row tile (multiple of 8); adaptive so tiny inputs don't over-pad.
    TM = min(512, _round_up(M, 8))
    M_pad = _round_up(M, TM)
    if M_pad != M:
        patches = jnp.pad(patches, ((0, M_pad - M), (0, 0)))

    if matmul_dtype is not None:
        patches = patches.astype(matmul_dtype)
        w_mat = w_mat.astype(matmul_dtype)

    apply_norm = gamma is not None
    operands = [patches, w_mat, b_row]
    in_specs = [
        pl.BlockSpec((TM, K), lambda i: (i, 0)),
        pl.BlockSpec((K, E_pad), lambda i: (0, 0)),
        pl.BlockSpec((1, E_pad), lambda i: (0, 0)),
    ]
    if apply_norm:
        if E_pad != E:
            gamma = jnp.pad(gamma, (0, E_pad - E))
            beta = jnp.pad(beta, (0, E_pad - E))
        operands += [gamma.reshape(1, E_pad).astype(jnp.float32),
                     beta.reshape(1, E_pad).astype(jnp.float32)]
        in_specs += [pl.BlockSpec((1, E_pad), lambda i: (0, 0)),
                     pl.BlockSpec((1, E_pad), lambda i: (0, 0))]
        kernel = functools.partial(_patch_embed_kernel_norm, embed_dim=E, eps=eps)
    else:
        kernel = _patch_embed_kernel_nonorm

    in_bytes = jnp.dtype(patches.dtype).itemsize
    cost = pl.CostEstimate(
        flops=2 * M_pad * K * E_pad,
        transcendentals=M_pad if apply_norm else 0,
        bytes_accessed=(M_pad * K * in_bytes + K * E_pad * in_bytes
                        + M_pad * E_pad * 4 + 3 * E_pad * 4),
    )

    out = pl.pallas_call(
        kernel,
        out_shape=jax.ShapeDtypeStruct((M_pad, E_pad), jnp.float32),
        grid_spec=pltpu.PrefetchScalarGridSpec(
            num_scalar_prefetch=0,
            grid=(M_pad // TM,),
            in_specs=in_specs,
            out_specs=pl.BlockSpec((TM, E_pad), lambda i: (i, 0)),
        ),
        compiler_params=pltpu.CompilerParams(dimension_semantics=("parallel",)),
        cost_estimate=cost,
    )(*operands)

    out = out[:M, :E]  # drop row and lane padding
    # (B*Hp*Wp, E) -> (B, E, Hp, Wp)  (NCHW output, same as the PyTorch module)
    return out.reshape(B, Hp, Wp, E).transpose(0, 3, 1, 2)


def _reference(x, weight, bias, gamma=None, beta=None, *, patch_size=(4, 4), eps=1e-5):
    ph, pw = patch_size
    B, C, H, W = x.shape
    pad_w = (-W) % pw
    pad_h = (-H) % ph
    if pad_w or pad_h:
        x = jnp.pad(x, ((0, 0), (0, 0), (0, pad_h), (0, pad_w)))
    y = jax.lax.conv_general_dilated(
        x, weight, window_strides=(ph, pw), padding="VALID",
        dimension_numbers=("NCHW", "OIHW", "NCHW"),
    ) + bias.reshape(1, -1, 1, 1)
    if gamma is not None:
        B_, E, Hp, Wp = y.shape
        t = y.reshape(B_, E, Hp * Wp).transpose(0, 2, 1)  # (B, N, E)
        mean = jnp.mean(t, axis=-1, keepdims=True)
        var = jnp.mean((t - mean) ** 2, axis=-1, keepdims=True)
        t = (t - mean) * jax.lax.rsqrt(var + eps) * gamma + beta
        y = t.transpose(0, 2, 1).reshape(B_, E, Hp, Wp)
    return y


if __name__ == "__main__":
    key = jax.random.PRNGKey(0)
    kx, kw, kb, kg, kbeta = jax.random.split(key, 5)

    # Small shapes consistent with the module: patch_size=4, in_chans=3, embed_dim=32.
    B, C, H, W = 2, 3, 16, 18  # W=18 exercises the padding branch (18 % 4 != 0)
    E, ph, pw = 32, 4, 4

    x = jax.random.normal(kx, (B, C, H, W), jnp.float32)
    weight = jax.random.normal(kw, (E, C, ph, pw), jnp.float32) * 0.05
    bias = jax.random.normal(kb, (E,), jnp.float32) * 0.01
    gamma = 1.0 + 0.1 * jax.random.normal(kg, (E,), jnp.float32)
    beta = 0.1 * jax.random.normal(kbeta, (E,), jnp.float32)

    Hp, Wp = H // ph, (W + (-W) % pw) // pw

    # Case 1: norm_layer=None (module default), f32 matmul.
    out1 = jax.block_until_ready(patch_embed_pallas(x, weight, bias, patch_size=(ph, pw)))
    ref1 = _reference(x, weight, bias, patch_size=(ph, pw))
    assert out1.shape == (B, E, Hp, Wp)
    assert jnp.max(jnp.abs(out1 - ref1)) < 1e-3

    # Case 2: norm_layer=nn.LayerNorm(embed_dim), f32 matmul.
    out2 = jax.block_until_ready(
        patch_embed_pallas(x, weight, bias, gamma, beta, patch_size=(ph, pw))
    )
    ref2 = _reference(x, weight, bias, gamma, beta, patch_size=(ph, pw))
    assert jnp.max(jnp.abs(out2 - ref2)) < 1e-3

    # Case 3: bf16 matmul operands (bandwidth optimization for v6e/v7x); f32 accumulate/LayerNorm.
    out3 = jax.block_until_ready(
        patch_embed_pallas(x, weight, bias, gamma, beta, patch_size=(ph, pw),
                           matmul_dtype=jnp.bfloat16)
    )
    assert jnp.max(jnp.abs(out3 - ref2)) < 3e-2  # looser tolerance for bf16 inputs

    print("KERNEL_OK")
</pallas_src>

<mosaic_0001>
module attributes {stable_mosaic.version = 11 : i64} {
  func.func @_patch_embed_kernel_nonorm(%arg0: i32, %arg1: memref<40x48xf32, #tpu.memory_space<vmem>>, %arg2: memref<48x128xf32, #tpu.memory_space<vmem>>, %arg3: memref<1x128xf32, #tpu.memory_space<vmem>>, %arg4: memref<40x128xf32, #tpu.memory_space<vmem>>) attributes {dimension_semantics = [#tpu.dimension_semantics<parallel>], iteration_bounds = array<i64: 1>, scalar_prefetch = 0 : i64, scratch_operands = 0 : i64, tpu.core_type = #tpu.core_type<tc>, window_params = [{transform_indices = @transform_0, window_bounds = array<i64: 40, 48>}, {pipeline_mode = #tpu.pipeline_mode<synchronous>, transform_indices = @transform_1, window_bounds = array<i64: 48, 128>}, {pipeline_mode = #tpu.pipeline_mode<synchronous>, transform_indices = @transform_2, window_bounds = array<i64: 1, 128>}, {transform_indices = @transform_3, window_bounds = array<i64: 40, 128>}]} {
    %c0 = arith.constant 0 : index
    %c0_0 = arith.constant 0 : index
    %0 = vector.load %arg1[%c0, %c0_0] : memref<40x48xf32, #tpu.memory_space<vmem>>, vector<40x48xf32>
    %c0_1 = arith.constant 0 : index
    %c0_2 = arith.constant 0 : index
    %1 = vector.load %arg2[%c0_1, %c0_2] : memref<48x128xf32, #tpu.memory_space<vmem>>, vector<48x128xf32>
    %cst = arith.constant dense<0.000000e+00> : vector<40x128xf32>
    %2 = tpu.matmul %0, %1, %cst {dimension_numbers = #tpu.dot_dimension_numbers<[1], [0], [0], [1], [0, 0, 1, 1], [], []>} : vector<40x48xf32>, vector<48x128xf32>, vector<40x128xf32> -> vector<40x128xf32>
    %c0_3 = arith.constant 0 : index
    %c0_4 = arith.constant 0 : index
    %3 = vector.load %arg3[%c0_3, %c0_4] : memref<1x128xf32, #tpu.memory_space<vmem>>, vector<1x128xf32>
    %4 = vector.broadcast %3 : vector<1x128xf32> to vector<40x128xf32>
    %5 = arith.addf %2, %4 : vector<40x128xf32>
    %c0_5 = arith.constant 0 : index
    %c0_6 = arith.constant 0 : index
    %6 = vector.load %arg4[%c0_5, %c0_6] : memref<40x128xf32, #tpu.memory_space<vmem>>, vector<40x128xf32>
    tpu.vector_store %arg4[%c0_5, %c0_6], %5 {strides = array<i32>} : memref<40x128xf32, #tpu.memory_space<vmem>>, vector<40x128xf32>,
    return
  }
  func.func @transform_0(%arg0: i32) -> (i32, i32) {
    %c0_i32 = arith.constant 0 : i32
    %c0_i32_0 = arith.constant 0 : i32
    return %arg0, %c0_i32 : i32, i32
  }
  func.func @transform_1(%arg0: i32) -> (i32, i32) {
    %c0_i32 = arith.constant 0 : i32
    %c0_i32_0 = arith.constant 0 : i32
    %c0_i32_1 = arith.constant 0 : i32
    return %c0_i32, %c0_i32_0 : i32, i32
  }
  func.func @transform_2(%arg0: i32) -> (i32, i32) {
    %c0_i32 = arith.constant 0 : i32
    %c0_i32_0 = arith.constant 0 : i32
    %c0_i32_1 = arith.constant 0 : i32
    return %c0_i32, %c0_i32_0 : i32, i32
  }
  func.func @transform_3(%arg0: i32) -> (i32, i32) {
    %c0_i32 = arith.constant 0 : i32
    %c0_i32_0 = arith.constant 0 : i32
    return %arg0, %c0_i32 : i32, i32
  }
}

</mosaic_0001>

<llo_original>
// kernel: tpu_custom_call.1
$region0: #{tpu_custom_call.1}
  #allocation0 [shape = 'u32[]', space=smem, size = 0x4, offset = 0x4, fixed_abs, tag = 'smem constant byte address 0x4 - core index']
  #allocation1 [shape = 'u32[144,128]{1,0:T(1,128)}', space=vmem, size = 0x12000, scoped, tag = 'internal scratch']
  %s0 = inlined_call_operand.hbm [shape: f32[40,48], index: 0, kind: input, shape index: {}]
  %s1 = inlined_call_operand.hbm [shape: f32[48,128], index: 1, kind: input, shape index: {}]
  %s2 = inlined_call_operand.vmem [shape: f32[1,128], index: 2, kind: input, shape index: {}]
  %s3 = inlined_call_operand.hbm [shape: f32[40,128], index: 3, kind: output, shape index: {}]
  %s4 = sld [smem:[#allocation0]]
  $region30: #{tpu_custom_call.1} parent=0
    _
  %s6 = ssub.s32 1, %s4
  %s7 = scalar_select 0, %s6, %s4
  $region1: #{tpu_custom_call.1} parent=0
    #allocation2 [shape = 'u8[20480]{0}', space=vmem, size = 0x5000, scoped, tag = 'input window, operand 0, single buffered']
    #allocation3 [shape = 's32[1]{0}', space=sflag, size = 0x4, scoped, tag = 'scoped memory for tpu_custom_call.1']
    #allocation4 [shape = 's32[1]{0}', space=sflag, size = 0x4, scoped, tag = 'scoped memory for tpu_custom_call.1']
    #allocation5 [shape = 'u8[24576]{0}', space=vmem, size = 0x6000, scoped, tag = 'input window, operand 1, single buffered']
    #allocation6 [shape = 's32[1]{0}', space=sflag, size = 0x4, scoped, tag = 'scoped memory for tpu_custom_call.1']
    #allocation7 [shape = 'u8[20480]{0}', space=vmem, size = 0x5000, scoped, tag = 'output window, operand 0, single buffered']
    %8 = vsyncpa [#allocation3], 0
    %9 = vsyncpa [#allocation6], 0
    %10 = vsyncpa [#allocation4], 0
    // Predicated region
    $region2: #{tpu_custom_call.1} parent=1 // pred_check
      _
    $region3: #{tpu_custom_call.1} parent=1 // pred_check_branch
      %12 = sbr.rel (0) target = $region5
    $region4: #{tpu_custom_call.1} parent=1 // pred_region
      %s14 = ssub.s32 640, 640
      %15 = vsyncadd [#allocation3], %s14
      %s16 = sshll.u32 [#allocation2], 4
      %s17 = int_to_ptr.vmem [resolvable:$true] %s16
      %22 = dma.hbm_to_vmem [thread:$0]  %s0, 640, %s17, [#allocation3], 128, 128, 8
    $region5: #{tpu_custom_call.1} parent=1 // pred_fallthru
      _
    // Predicated region
    $region6: #{tpu_custom_call.1} parent=1 // pred_check
      _
    $region7: #{tpu_custom_call.1} parent=1 // pred_check_branch
      %24 = sbr.rel (0) target = $region9
    $region8: #{tpu_custom_call.1} parent=1 // pred_region
      %s26 = ssub.s32 768, 768
      %27 = vsyncadd [#allocation6], %s26
      %s28 = sshll.u32 [#allocation5], 4
      %s29 = int_to_ptr.vmem [resolvable:$true] %s28
      %34 = dma.hbm_to_vmem [thread:$0]  %s1, 768, %s29, [#allocation6], 128, 128, 8
    $region9: #{tpu_custom_call.1} parent=1 // pred_fallthru
      _
    // Predicated region
    $region10: #{tpu_custom_call.1} parent=1 // pred_check
      _
    $region11: #{tpu_custom_call.1} parent=1 // pred_check_branch
      %36 = sbr.rel (0) target = $region13
    $region12: #{tpu_custom_call.1} parent=1 // pred_region
      _
    $region13: #{tpu_custom_call.1} parent=1 // pred_fallthru
      _
    // Predicated region
    $region14: #{tpu_custom_call.1} parent=1 // pred_check
      _
    $region15: #{tpu_custom_call.1} parent=1 // pred_check_branch
      %38 = sbr.rel (0) target = $region17
    $region16: #{tpu_custom_call.1} parent=1 // pred_region
      %39 = dma.done [#allocation3], 640
    $region17: #{tpu_custom_call.1} parent=1 // pred_fallthru
      _
    // Predicated region
    $region18: #{tpu_custom_call.1} parent=1 // pred_check
      _
    $region19: #{tpu_custom_call.1} parent=1 // pred_check_branch
      %41 = sbr.rel (0) target = $region21
    $region20: #{tpu_custom_call.1} parent=1 // pred_region
      %42 = dma.done [#allocation6], 768
    $region21: #{tpu_custom_call.1} parent=1 // pred_fallthru
      _
    %v43 = vld [vmem:[#allocation2] sm:$0xff]
    %v44 = vld [vmem:[#allocation2 + $0x8] sm:$0xff]
    %v45 = vld [vmem:[#allocation2 + $0x10] sm:$0xff]
    %v46 = vld [vmem:[#allocation2 + $0x18] sm:$0xff]
    %v47 = vld [vmem:[#allocation2 + $0x20] sm:$0xff]
    %v48 = vld [vmem:[#allocation5] sm:$0xff]
    %v49 = vld [vmem:[#allocation5 + $0x8] sm:$0xff]
    %v50 = vld [vmem:[#allocation5 + $0x10] sm:$0xff]
    %v51 = vld [vmem:[#allocation5 + $0x18] sm:$0xff]
    %v52 = vld [vmem:[#allocation5 + $0x20] sm:$0xff]
    %v53 = vld [vmem:[#allocation5 + $0x28] sm:$0xff]
    %v54 = vld [vmem:[%s2] sm:$0x1]
    %v56 = vlaneseq
    %v57 = vshrl.u32 %v56, 7
    %v58 = vsub.s32 0, %v57
    %v59 = vrot.slane %v54, %v58
    %vm61 = vcmask 392192
    %v63 = vsel %vm61, %v43, 0
    %v66 = vsel %vm61, %v44, 0
    %v69 = vsel %vm61, %v45, 0
    %v72 = vsel %vm61, %v46, 0
    %v75 = vsel %vm61, %v47, 0
    %77 = vmatprep.subr.mxu0 0.0
    %78 = vmatpush1.msra.mxu0 %v48
    %79 = vmatprep.subr.mxu0 0.0
    %80 = vmatpush1.msra.mxu0 %v49
    %81 = vmatprep.subr.mxu0 0.0
    %82 = vmatpush1.msra.mxu0 %v50
    %83 = vmatprep.subr.mxu0 0.0
    %84 = vmatpush1.msra.mxu0 %v51
    %85 = vmatprep.subr.mxu0 0.0
    %86 = vmatpush1.msra.mxu0 %v52
    %87 = vmatprep.subr.mxu0 0.0
    %88 = vmatpush1.msra.mxu0 %v53
    %89 = vmatprep.subr.mxu0 0.0
    %90 = vmatpush1.msra.mxu0 0.0
    %91 = vmatprep.subr.mxu0 0.0
    %92 = vmatpush1.msra.mxu0 0.0
    %93 = vmatprep.subr.mxu0 0.0
    %94 = vmatpush1.msra.mxu0 0.0
    %95 = vmatprep.subr.mxu0 0.0
    %96 = vmatpush1.msra.mxu0 0.0
    %97 = vmatprep.subr.mxu0 0.0
    %98 = vmatpush1.msra.mxu0 0.0
    %99 = vmatprep.subr.mxu0 0.0
    %100 = vmatpush1.msra.mxu0 0.0
    %101 = vmatprep.subr.mxu0 0.0
    %102 = vmatpush1.msra.mxu0 0.0
    %103 = vmatprep.subr.mxu0 0.0
    %104 = vmatpush1.msra.mxu0 0.0
    %105 = vmatprep.subr.mxu0 0.0
    %106 = vmatpush1.msra.mxu0 0.0
    %107 = vmatprep.subr.mxu0 0.0
    %108 = vmatpush1.msra.mxu0 0.0
    %109 = vmatprep.subr.mxu0 0.0
    %110 = vmatpush1.msra.mxu0 0.0
    %111 = vmatprep.subr.mxu0 0.0
    %112 = vmatpush1.msra.mxu0 0.0
    %113 = vmatprep.subr.mxu0 0.0
    %114 = vmatpush1.msra.mxu0 0.0
    %115 = vmatprep.subr.mxu0 0.0
    %116 = vmatpush1.msra.mxu0 0.0
    %117 = vmatprep.subr.mxu0 0.0
    %118 = vmatpush1.msra.mxu0 0.0
    %119 = vmatprep.subr.mxu0 0.0
    %120 = vmatpush1.msra.mxu0 0.0
    %121 = vmatprep.subr.mxu0 0.0
    %122 = vmatpush1.msra.mxu0 0.0
    %123 = vmatprep.subr.mxu0 0.0
    %124 = vmatpush1.msra.mxu0 0.0
    %125 = vmatprep.subr.mxu0 0.0
    %126 = vmatpush1.msra.mxu0 0.0
    %127 = vmatprep.subr.mxu0 0.0
    %128 = vmatpush1.msra.mxu0 0.0
    %129 = vmatprep.subr.mxu0 0.0
    %130 = vmatpush1.msra.mxu0 0.0
    %131 = vmatprep.subr.mxu0 0.0
    %132 = vmatpush1.msra.mxu0 0.0
    %133 = vmatprep.subr.mxu0 0.0
    %134 = vmatpush1.msra.mxu0 0.0
    %135 = vmatprep.subr.mxu0 0.0
    %136 = vmatpush1.msra.mxu0 0.0
    %137 = vmatprep.subr.mxu0 0.0
    %138 = vmatpush1.msra.mxu0 0.0
    %139 = vmatprep.subr.mxu0 0.0
    %140 = vmatpush1.msra.mxu0 0.0
    %141 = vmatprep.mubr.f32.mxu0 0.0
    %142 = vmatmul.mubr.f32.gmra.mrb[0].mxu0 %v63
    %v143 = vpop.f32.mrb[0].mxu0
    %v144 = vadd.f32 %v59, %v143
    %v145 = vpop.f32.mrb[0].mxu0
    %146 = vmatprep.mubr.f32.mxu0 0.0
    %147 = vmatmul.mubr.f32.gmra.mrb[0].mxu0 %v66
    %v148 = vpop.f32.mrb[0].mxu0
    %v149 = vadd.f32 %v59, %v148
    %v150 = vpop.f32.mrb[0].mxu0
    %151 = vmatprep.mubr.f32.mxu0 0.0
    %152 = vmatmul.mubr.f32.gmra.mrb[0].mxu0 %v69
    %v153 = vpop.f32.mrb[0].mxu0
    %v154 = vadd.f32 %v59, %v153
    %v155 = vpop.f32.mrb[0].mxu0
    %156 = vmatprep.mubr.f32.mxu0 0.0
    %157 = vmatmul.mubr.f32.gmra.mrb[0].mxu0 %v72
    %v158 = vpop.f32.mrb[0].mxu0
    %v159 = vadd.f32 %v59, %v158
    %v160 = vpop.f32.mrb[0].mxu0
    %161 = vmatprep.mubr.f32.mxu0 0.0
    %162 = vmatmul.mubr.f32.gmra.mrb[0].mxu0 %v75
    %v163 = vpop.f32.mrb[0].mxu0
    %v164 = vadd.f32 %v59, %v163
    %v165 = vpop.f32.mrb[0].mxu0
    %166 = vdwg.mxu0
    %167 = vst [vmem:[#allocation7] sm:$0xff] %v144
    %168 = vst [vmem:[#allocation7 + $0x8] sm:$0xff] %v149
    %169 = vst [vmem:[#allocation7 + $0x10] sm:$0xff] %v154
    %170 = vst [vmem:[#allocation7 + $0x18] sm:$0xff] %v159
    %171 = vst [vmem:[#allocation7 + $0x20] sm:$0xff] %v164
    // Predicated region
    $region22: #{tpu_custom_call.1} parent=1 // pred_check
      _
    $region23: #{tpu_custom_call.1} parent=1 // pred_check_branch
      %173 = sbr.rel (0) target = $region25
    $region24: #{tpu_custom_call.1} parent=1 // pred_region
      %s175 = ssub.s32 640, 640
      %176 = vsyncadd [#allocation4], %s175
      %s177 = sshll.u32 [#allocation7], 4
      %s178 = int_to_ptr.vmem [resolvable:$true] %s177
      %183 = dma.vmem_to_hbm [thread:$0]  %s178, 640, %s3, [#allocation4], 128, 128, 8
    $region25: #{tpu_custom_call.1} parent=1 // pred_fallthru
      _
    // Predicated region
    $region26: #{tpu_custom_call.1} parent=1 // pred_check
      _
    $region27: #{tpu_custom_call.1} parent=1 // pred_check_branch
      %185 = sbr.rel (0) target = $region29
    $region28: #{tpu_custom_call.1} parent=1 // pred_region
      %186 = dma.done [#allocation4], 640
    $region29: #{tpu_custom_call.1} parent=1 // pred_fallthru
      _
    %187 = vsyncpa [#allocation3], 1
    %188 = vsyncpa [#allocation6], 1
    %189 = vsyncpa [#allocation4], 1

</llo_original>
